<compile_context>
chip_gen: v6e
topology: v6e:2x2x1
jax: 0.10.0
libtpu: 0.0.40
codegen_flags: <defaults>
</compile_context>

<pallas_src>
import jax
import jax.numpy as jnp
from jax import lax
from jax.experimental import pallas as pl
from jax.experimental.pallas import tpu as pltpu


# ----------------------------------------------------------------------------
# helpers
# ----------------------------------------------------------------------------
def _cdiv(a, b):
    return -(-a // b)


def _round_up(a, b):
    return _cdiv(a, b) * b


def _vmem_budget_bytes():
    """~75% of per-core VMEM. Falls back to 64 MiB (v7x per-core) if the
    hardware query is unavailable. (This try/except only guards the capability
    probe -- it never wraps the kernel itself.)"""
    cap = None
    try:
        cap = getattr(pltpu.get_tpu_info(), "vmem_capacity_bytes", None)
    except Exception:
        cap = None
    if not cap:
        cap = 64 << 20
    return int(cap) * 3 // 4


# ----------------------------------------------------------------------------
# kernels
# ----------------------------------------------------------------------------
def _make_nudged_kernel(m_axis, n_axis, cache_z, per_m_cache, precision):
    def _dot(a, b):
        return jnp.dot(a, b, preferred_element_type=jnp.float32,
                       precision=precision)

    if not cache_z:
        def kernel(x_ref, wpt_ref, vht_ref, ut_ref, bias_ref, o_ref):
            x = x_ref[...]                                        # (tm, D)
            y = _dot(x, wpt_ref[...])                             # (tm, tn) f32
            z = _dot(x, vht_ref[...])                             # (tm, 128) f32
            y = y + _dot(z.astype(ut_ref.dtype), ut_ref[...])     # (tm, tn)
            o_ref[...] = (y + bias_ref[...]).astype(o_ref.dtype)
        return kernel

    def kernel(x_ref, wpt_ref, vht_ref, ut_ref, bias_ref, o_ref, z_ref):
        # z depends only on the M tile: compute it once per row block (at the
        # first N tile) and reuse the cached value for every other N tile.
        slot = pl.program_id(m_axis) if per_m_cache else 0

        @pl.when(pl.program_id(n_axis) == 0)
        def _():
            z_ref[slot] = _dot(x_ref[...], vht_ref[...])          # (tm, 128) f32

        y = _dot(x_ref[...], wpt_ref[...])                        # (tm, tn) f32
        y = y + _dot(z_ref[slot].astype(ut_ref.dtype), ut_ref[...])
        o_ref[...] = (y + bias_ref[...]).astype(o_ref.dtype)

    return kernel


def _make_folded_kernel(precision):
    # fold_nudge path: single GEMM (nudge already folded into W_p).
    def kernel(x_ref, wpt_ref, bias_ref, o_ref):
        y = jnp.dot(x_ref[...], wpt_ref[...],
                    preferred_element_type=jnp.float32, precision=precision)
        o_ref[...] = (y + bias_ref[...]).astype(o_ref.dtype)
    return kernel


# ----------------------------------------------------------------------------
# pallas_call builder
# ----------------------------------------------------------------------------
def _build_call(*, Mp, D, Np, R128, tm, tn, out_dtype, m_outer, cache_z,
                per_m_cache, vmem_limit, precision, folded):
    Mi, Nj = Mp // tm, Np // tn

    if m_outer:
        grid = (Mi, Nj)
        m_axis, n_axis = 0, 1
        imap_x   = lambda i, j: (i, 0)
        imap_col = lambda i, j: (0, j)       # W_p.T / (sigma*U_r).T / bias
        imap_vh  = lambda i, j: (0, 0)
        imap_out = lambda i, j: (i, j)
        dims = ("parallel", "arbitrary" if cache_z else "parallel")
    else:
        # weight-read-once order: N outer, M inner -> each weight block is
        # fetched from HBM exactly once; only the smaller x tiles are restreamed.
        grid = (Nj, Mi)
        m_axis, n_axis = 1, 0
        imap_x   = lambda j, i: (i, 0)
        imap_col = lambda j, i: (0, j)
        imap_vh  = lambda j, i: (0, 0)
        imap_out = lambda j, i: (i, j)
        dims = ("arbitrary", "parallel")     # z-cache dependency lives on the N axis

    if folded:
        in_specs = [
            pl.BlockSpec((tm, D), imap_x),        # x tile
            pl.BlockSpec((D, tn), imap_col),      # W_eff.T
            pl.BlockSpec((1, tn), imap_col),      # bias
        ]
        scratch = []
        kernel = _make_folded_kernel(precision)
    else:
        in_specs = [
            pl.BlockSpec((tm, D), imap_x),        # x tile
            pl.BlockSpec((D, tn), imap_col),      # W_p.T
            pl.BlockSpec((D, R128), imap_vh),     # Vh_r.T (lane-padded, resident)
            pl.BlockSpec((R128, tn), imap_col),   # (sigma*U_r).T (lane-padded)
            pl.BlockSpec((1, tn), imap_col),      # bias
        ]
        if cache_z:
            zslots = Mi if per_m_cache else 1
            scratch = [pltpu.VMEM((zslots, tm, R128), jnp.float32)]
        else:
            scratch = []
        kernel = _make_nudged_kernel(m_axis, n_axis, cache_z, per_m_cache,
                                     precision)

    return pl.pallas_call(
        kernel,
        out_shape=jax.ShapeDtypeStruct((Mp, Np), out_dtype),
        grid_spec=pltpu.PrefetchScalarGridSpec(
            num_scalar_prefetch=0,
            grid=grid,
            in_specs=in_specs,
            out_specs=pl.BlockSpec((tm, tn), imap_out),
            scratch_shapes=scratch,
        ),
        compiler_params=pltpu.CompilerParams(
            dimension_semantics=dims,
            vmem_limit_bytes=int(vmem_limit),
        ),
    )


# ----------------------------------------------------------------------------
# public wrapper
# ----------------------------------------------------------------------------
def nudged_linear(x, W_p, bias, U_r, sigma, Vh_r, *, tm=256, tn=None,
                  compute_dtype=jnp.bfloat16, out_dtype=None, precision=None,
                  fold_nudge=False):
    """NudgedLinear forward.

    x: (..., D); W_p: (OUT, D); bias: (OUT,) or None; U_r: (OUT, R);
    sigma: (R,); Vh_r: (R, D).  Returns (..., OUT) in `out_dtype` (default
    x.dtype).  `fold_nudge=True` folds the (frozen) rank-R nudge into W_p once
    and runs a single GEMM.
    """
    orig_shape = x.shape
    D = int(orig_shape[-1])
    OUT = int(W_p.shape[0])
    R = int(Vh_r.shape[0])
    if out_dtype is None:
        out_dtype = x.dtype

    x2d = x.reshape(-1, D)
    M = int(x2d.shape[0])

    cbytes = jnp.dtype(compute_dtype).itemsize
    obytes = jnp.dtype(out_dtype).itemsize

    # ---------------- M tiling (multiple of 16, balanced tiles) -------------
    tm_req = max(16, min(int(tm), _round_up(M, 16)))
    n_m = _cdiv(M, tm_req)
    if n_m == 1 and M >= 32:
        n_m = 2                      # give a dual-TC chip (v7x) two row blocks
    tm = _round_up(_cdiv(M, n_m), 16)
    Mp = n_m * tm
    Mi = n_m

    R128 = _round_up(max(R, 1), 128)
    budget = _vmem_budget_bytes()
    rank = 0 if fold_nudge else R128

    def est(tn_, zslots_):
        # Everything is double-buffered by default (resident blocks cost
        # footprint only -- they are not re-DMA'd while their index is fixed).
        return (2 * tm * D * cbytes            # x tiles
                + 2 * D * tn_ * cbytes         # W.T blocks
                + 2 * rank * tn_ * cbytes      # (sigma*U_r).T blocks
                + 2 * D * rank * cbytes        # Vh_r.T (resident)
                + 2 * tn_ * 4                  # bias
                + 2 * tm * tn_ * obytes        # output tiles
                + zslots_ * tm * rank * 4)     # cached z (f32)

    Np_min = _round_up(OUT, 128)

    # ---------------- N tiling (VMEM-budget aware) ---------------------------
    if tn is not None:
        tn = max(128, _round_up(min(int(tn), Np_min), 128))
    elif Mi == 1 and Np_min >= 256:
        # decode-style tiny M: split N so a 2-TensorCore chip has >=2 programs
        # along a parallel axis (z caching is skipped; both axes stay parallel).
        tn = _round_up(_cdiv(Np_min, 2), 128)
        while tn > 128 and est(tn, 0) > budget:
            tn -= 128
    elif est(Np_min, 1) <= budget:
        tn = Np_min                          # weights stay resident in VMEM
    else:
        tn = 128
        cand = (Np_min // 256) * 256         # prefer 256-multiples (v6e/v7x MXU)
        while cand >= 256:
            if est(cand, Mi) <= budget:
                tn = cand
                break
            cand -= 256
        # TODO(synk): if even tn=128 exceeds the budget (huge D), add a K-tiled
        # variant with an f32 VMEM accumulator instead of shrinking tn further.

    Np = _cdiv(OUT, tn) * tn
    Nj = Np // tn

    # ---------------- grid order / z caching ---------------------------------
    if fold_nudge or Nj == 1 or Mi == 1:
        m_outer, cache_z, per_m_cache = True, False, False
    else:
        weight_major = D * Np * cbytes > Mp * D * cbytes
        m_outer = not weight_major
        per_m_cache = (not m_outer) and (Mi * tm * R128 * 4
                                         <= min(budget // 8, 8 << 20))
        cache_z = m_outer or per_m_cache

    vmem_limit = min(budget + (8 << 20), 100 << 20)

    # ---------------- one-time operand prep (plain JAX glue) -----------------
    if Mp != M:
        x2d = jnp.pad(x2d, ((0, Mp - M), (0, 0)))
    xc = x2d.astype(compute_dtype)

    if bias is None:
        bias2d = jnp.zeros((1, OUT), jnp.float32)
    else:
        bias2d = bias.astype(jnp.float32).reshape(1, OUT)
    if Np != OUT:
        bias2d = jnp.pad(bias2d, ((0, 0), (0, Np - OUT)))

    if fold_nudge:
        w_eff = W_p.astype(jnp.float32) + jnp.matmul(
            U_r.astype(jnp.float32) * sigma.astype(jnp.float32),
            Vh_r.astype(jnp.float32), precision=lax.Precision.HIGHEST)
        wpt = w_eff.T.astype(compute_dtype)                  # (D, OUT)
        if Np != OUT:
            wpt = jnp.pad(wpt, ((0, 0), (0, Np - OUT)))
        call = _build_call(Mp=Mp, D=D, Np=Np, R128=0, tm=tm, tn=tn,
                           out_dtype=out_dtype, m_outer=m_outer, cache_z=False,
                           per_m_cache=False, vmem_limit=vmem_limit,
                           precision=precision, folded=True)
        out = call(xc, wpt, bias2d)
    else:
        wpt = W_p.T.astype(compute_dtype)                    # (D, OUT)
        ut = (U_r * sigma).T.astype(compute_dtype)           # (R, OUT)
        vht = Vh_r.T.astype(compute_dtype)                   # (D, R)
        # Lane-align the rank dim (R -> 128): MXU cost is unchanged, but it
        # removes sub-128-lane operands / masked loads on the nudge path.
        if R128 != R:
            vht = jnp.pad(vht, ((0, 0), (0, R128 - R)))
            ut = jnp.pad(ut, ((0, R128 - R), (0, 0)))
        if Np != OUT:
            wpt = jnp.pad(wpt, ((0, 0), (0, Np - OUT)))
            ut = jnp.pad(ut, ((0, 0), (0, Np - OUT)))
        call = _build_call(Mp=Mp, D=D, Np=Np, R128=R128, tm=tm, tn=tn,
                           out_dtype=out_dtype, m_outer=m_outer, cache_z=cache_z,
                           per_m_cache=per_m_cache, vmem_limit=vmem_limit,
                           precision=precision, folded=False)
        out = call(xc, wpt, vht, ut, bias2d)

    if Np != OUT:
        out = out[:, :OUT]
    if Mp != M:
        out = out[:M]
    return out.reshape(*orig_shape[:-1], OUT)


def nudged_linear_ref(x, W_p, bias, U_r, sigma, Vh_r):
    hp = lax.Precision.HIGHEST
    y1 = jnp.matmul(x, W_p.T, precision=hp) + bias
    z = jnp.matmul(x, Vh_r.T, precision=hp) * sigma
    y2 = jnp.matmul(z, U_r.T, precision=hp)
    return y1 + y2


# ----------------------------------------------------------------------------
# self-test
# ----------------------------------------------------------------------------
if __name__ == "__main__":
    def make(B, S, D, OUT, R, key):
        kx, kw, kb, ku, ks, kv = jax.random.split(key, 6)
        x = jax.random.normal(kx, (B, S, D), dtype=jnp.float32)
        W_p = jax.random.normal(kw, (OUT, D), dtype=jnp.float32) * 0.05
        bias = jax.random.normal(kb, (OUT,), dtype=jnp.float32) * 0.1
        U_r = jax.random.normal(ku, (OUT, R), dtype=jnp.float32) * 0.05
        sigma = jax.random.normal(ks, (R,), dtype=jnp.float32)
        Vh_r = jax.random.normal(kv, (R, D), dtype=jnp.float32) * 0.05
        return x, W_p, bias, U_r, sigma, Vh_r

    key = jax.random.PRNGKey(0)
    k1, k2 = jax.random.split(key)

    # Case 1: decode-style small M (batch=2, seq=10, in=128, out=256, rank=8).
    # Exercises M padding and the forced 2-way N split (>=2 grid programs).
    args1 = make(2, 10, 128, 256, 8, k1)
    ref1 = nudged_linear_ref(*args1)

    out_f32 = jax.block_until_ready(
        nudged_linear(*args1, compute_dtype=jnp.float32))
    assert out_f32.shape == ref1.shape, out_f32.shape
    assert jnp.allclose(out_f32, ref1, atol=2e-4, rtol=2e-4), \
        float(jnp.max(jnp.abs(out_f32 - ref1)))

    out_bf16 = jax.block_until_ready(nudged_linear(*args1))
    assert jnp.allclose(out_bf16, ref1, atol=5e-2, rtol=5e-2), \
        float(jnp.max(jnp.abs(out_bf16 - ref1)))

    # Case 2: larger M with forced N tiling (tn=128). Exercises the
    # weight-read-once (N-outer) grid order and the per-row-block cached z.
    args2 = make(4, 96, 128, 512, 8, k2)
    ref2 = nudged_linear_ref(*args2)
    out2 = jax.block_until_ready(nudged_linear(*args2, tn=128))
    assert out2.shape == ref2.shape, out2.shape
    assert jnp.allclose(out2, ref2, atol=5e-2, rtol=5e-2), \
        float(jnp.max(jnp.abs(out2 - ref2)))

    # Case 3: frozen-weight inference path (nudge folded into W_p, single GEMM).
    out3 = jax.block_until_ready(
        nudged_linear(*args1, compute_dtype=jnp.float32, fold_nudge=True))
    assert jnp.allclose(out3, ref1, atol=2e-4, rtol=2e-4), \
        float(jnp.max(jnp.abs(out3 - ref1)))

    print("KERNEL_OK")
</pallas_src>

<mosaic_0001>
module attributes {stable_mosaic.version = 11 : i64} {
  func.func @kernel(%arg0: i32, %arg1: i32, %arg2: memref<32x128xf32, #tpu.memory_space<vmem>>, %arg3: memref<128x128xf32, #tpu.memory_space<vmem>>, %arg4: memref<128x128xf32, #tpu.memory_space<vmem>>, %arg5: memref<128x128xf32, #tpu.memory_space<vmem>>, %arg6: memref<1x128xf32, #tpu.memory_space<vmem>>, %arg7: memref<32x128xf32, #tpu.memory_space<vmem>>) attributes {dimension_semantics = [#tpu.dimension_semantics<parallel>, #tpu.dimension_semantics<parallel>], iteration_bounds = array<i64: 1, 2>, scalar_prefetch = 0 : i64, scratch_operands = 0 : i64, tpu.core_type = #tpu.core_type<tc>, window_params = [{transform_indices = @transform_0, window_bounds = array<i64: 32, 128>}, {transform_indices = @transform_1, window_bounds = array<i64: 128, 128>}, {pipeline_mode = #tpu.pipeline_mode<synchronous>, transform_indices = @transform_2, window_bounds = array<i64: 128, 128>}, {transform_indices = @transform_3, window_bounds = array<i64: 128, 128>}, {transform_indices = @transform_4, window_bounds = array<i64: 1, 128>}, {transform_indices = @transform_5, window_bounds = array<i64: 32, 128>}]} {
    %c0 = arith.constant 0 : index
    %c0_0 = arith.constant 0 : index
    %0 = vector.load %arg2[%c0, %c0_0] : memref<32x128xf32, #tpu.memory_space<vmem>>, vector<32x128xf32>
    %c0_1 = arith.constant 0 : index
    %c0_2 = arith.constant 0 : index
    %1 = vector.load %arg3[%c0_1, %c0_2] : memref<128x128xf32, #tpu.memory_space<vmem>>, vector<128x128xf32>
    %cst = arith.constant dense<0.000000e+00> : vector<32x128xf32>
    %2 = tpu.matmul %0, %1, %cst {dimension_numbers = #tpu.dot_dimension_numbers<[1], [0], [0], [1], [0, 0, 1, 1], [], []>} : vector<32x128xf32>, vector<128x128xf32>, vector<32x128xf32> -> vector<32x128xf32>
    %c0_3 = arith.constant 0 : index
    %c0_4 = arith.constant 0 : index
    %3 = vector.load %arg4[%c0_3, %c0_4] : memref<128x128xf32, #tpu.memory_space<vmem>>, vector<128x128xf32>
    %cst_5 = arith.constant dense<0.000000e+00> : vector<32x128xf32>
    %4 = tpu.matmul %0, %3, %cst_5 {dimension_numbers = #tpu.dot_dimension_numbers<[1], [0], [0], [1], [0, 0, 1, 1], [], []>} : vector<32x128xf32>, vector<128x128xf32>, vector<32x128xf32> -> vector<32x128xf32>
    %c0_6 = arith.constant 0 : index
    %c0_7 = arith.constant 0 : index
    %5 = vector.load %arg5[%c0_6, %c0_7] : memref<128x128xf32, #tpu.memory_space<vmem>>, vector<128x128xf32>
    %cst_8 = arith.constant dense<0.000000e+00> : vector<32x128xf32>
    %6 = tpu.matmul %4, %5, %cst_8 {dimension_numbers = #tpu.dot_dimension_numbers<[1], [0], [0], [1], [0, 0, 1, 1], [], []>} : vector<32x128xf32>, vector<128x128xf32>, vector<32x128xf32> -> vector<32x128xf32>
    %7 = arith.addf %2, %6 : vector<32x128xf32>
    %c0_9 = arith.constant 0 : index
    %c0_10 = arith.constant 0 : index
    %8 = vector.load %arg6[%c0_9, %c0_10] : memref<1x128xf32, #tpu.memory_space<vmem>>, vector<1x128xf32>
    %9 = vector.broadcast %8 : vector<1x128xf32> to vector<32x128xf32>
    %10 = arith.addf %7, %9 : vector<32x128xf32>
    %c0_11 = arith.constant 0 : index
    %c0_12 = arith.constant 0 : index
    %11 = vector.load %arg7[%c0_11, %c0_12] : memref<32x128xf32, #tpu.memory_space<vmem>>, vector<32x128xf32>
    tpu.vector_store %arg7[%c0_11, %c0_12], %10 {strides = array<i32>} : memref<32x128xf32, #tpu.memory_space<vmem>>, vector<32x128xf32>,
    return
  }
  func.func @transform_0(%arg0: i32, %arg1: i32) -> (i32, i32) {
    %c0_i32 = arith.constant 0 : i32
    %c0_i32_0 = arith.constant 0 : i32
    return %arg0, %c0_i32 : i32, i32
  }
  func.func @transform_1(%arg0: i32, %arg1: i32) -> (i32, i32) {
    %c0_i32 = arith.constant 0 : i32
    %c0_i32_0 = arith.constant 0 : i32
    return %c0_i32, %arg1 : i32, i32
  }
  func.func @transform_2(%arg0: i32, %arg1: i32) -> (i32, i32) {
    %c0_i32 = arith.constant 0 : i32
    %c0_i32_0 = arith.constant 0 : i32
    %c0_i32_1 = arith.constant 0 : i32
    return %c0_i32, %c0_i32_0 : i32, i32
  }
  func.func @transform_3(%arg0: i32, %arg1: i32) -> (i32, i32) {
    %c0_i32 = arith.constant 0 : i32
    %c0_i32_0 = arith.constant 0 : i32
    return %c0_i32, %arg1 : i32, i32
  }
  func.func @transform_4(%arg0: i32, %arg1: i32) -> (i32, i32) {
    %c0_i32 = arith.constant 0 : i32
    %c0_i32_0 = arith.constant 0 : i32
    return %c0_i32, %arg1 : i32, i32
  }
  func.func @transform_5(%arg0: i32, %arg1: i32) -> (i32, i32) {
    %c0_i32 = arith.constant 0 : i32
    return %arg0, %arg1 : i32, i32
  }
}

</mosaic_0001>

<llo_original>
// kernel: tpu_custom_call.1
$region0: #{tpu_custom_call.1}
  #allocation0 [shape = 'u32[]', space=smem, size = 0x4, offset = 0x4, fixed_abs, tag = 'smem constant byte address 0x4 - core index']
  #allocation1 [shape = 'u32[144,128]{1,0:T(1,128)}', space=vmem, size = 0x12000, scoped, tag = 'internal scratch']
  %s0 = inlined_call_operand.hbm [shape: f32[32,128], index: 0, kind: input, shape index: {}]
  %s1 = inlined_call_operand.hbm [shape: f32[128,256], index: 1, kind: input, shape index: {}]
  %s2 = inlined_call_operand.hbm [shape: f32[128,128], index: 2, kind: input, shape index: {}]
  %s3 = inlined_call_operand.hbm [shape: f32[128,256], index: 3, kind: input, shape index: {}]
  %s4 = inlined_call_operand.vmem [shape: f32[1,256], index: 4, kind: input, shape index: {}]
  %s5 = inlined_call_operand.hbm [shape: f32[32,256], index: 5, kind: output, shape index: {}]
  %s6 = sld [smem:[#allocation0]]
  $region69: #{tpu_custom_call.1} parent=0
    _
  %s8 = ssub.s32 1, %s6
  %s9 = scalar_select 0, %s8, %s6
  $region1: #{tpu_custom_call.1} parent=0
    #allocation2 [shape = 'u8[16384]{0}', space=vmem, size = 0x4000, scoped, tag = 'input window, operand 0, single buffered']
    #allocation3 [shape = 's32[2]{0}', space=sflag, size = 0x8, scoped, tag = 'scoped memory for tpu_custom_call.1']
    #allocation4 [shape = 's32[2]{0}', space=sflag, size = 0x8, scoped, tag = 'scoped memory for tpu_custom_call.1']
    #allocation5 [shape = 'u8[131072]{0}', space=vmem, size = 0x20000, scoped, tag = 'input window, operand 1']
    #allocation6 [shape = 's32[2]{0}', space=sflag, size = 0x8, scoped, tag = 'scoped memory for tpu_custom_call.1']
    #allocation7 [shape = 'u8[65536]{0}', space=vmem, size = 0x10000, scoped, tag = 'input window, operand 2, single buffered']
    #allocation8 [shape = 'u8[131072]{0}', space=vmem, size = 0x20000, scoped, tag = 'input window, operand 3']
    #allocation9 [shape = 's32[2]{0}', space=sflag, size = 0x8, scoped, tag = 'scoped memory for tpu_custom_call.1']
    #allocation10 [shape = 'u8[32768]{0}', space=vmem, size = 0x8000, scoped, tag = 'output window, operand 0']
    %10 = vsyncpa [#allocation3], 0
    %11 = vsyncpa [#allocation6], 0
    %s12 = scalar_lea.sflag [#allocation6], 1
    %13 = vsyncpa %s12, 0
    %14 = vsyncpa [#allocation9], 0
    %s15 = scalar_lea.sflag [#allocation9], 1
    %16 = vsyncpa %s15, 0
    %17 = vsyncpa [#allocation4], 0
    %s18 = scalar_lea.sflag [#allocation4], 1
    %19 = vsyncpa %s18, 0
    loop: start=0, step=1, limit=4
    $region2: #{tpu_custom_call.1} parent=1 // loop_pre_header
      _
    $region3: #{tpu_custom_call.1} parent=1 // loop_header
      %s21 = sphi 0, %s25
      %p22 = scmp.ge.s32.totalorder %s21, 4
      %s28 = sphi 0, %s40
      %s29 = sphi 0, %s36
      %s30 = sphi 0, %s28
      %s31 = sphi 0, %s29
      %s32 = sphi 0, %s30
      %s33 = sphi 0, %s31
      %s43 = sphi 0, %s45
      %s46 = sphi 0, %s43
      %s47 = sphi 0, %s46
      %s63 = sphi 0, %s47
      %s69 = sphi 0, %s71
      %s72 = sphi 0, %s69
      %s73 = sphi 0, %s72
      %s89 = sphi 0, %s73
      %s93 = sphi 0, %s93
      %s95 = sphi 0, %s93
      %s96 = sphi 0, %s95
      %s110 = sphi 0, %s96
      %s116 = sphi 0, %s118
      %s119 = sphi 0, %s116
      %s120 = sphi 0, %s119
      %s136 = sphi 0, %s120
      %s142 = sphi 0, %s144
      %s145 = sphi 0, %s142
      %s146 = sphi 0, %s145
      %s162 = sphi 0, %s146
      %s170 = sphi 0, %s172
      %s173 = sphi 0, %s170
      %s174 = sphi 0, %s173
      %s190 = sphi 0, %s174
    $region4: #{tpu_custom_call.1} parent=1 // loop_header_branch
      %24 = sbr.rel (%p22) target = $region8
    $region5: #{tpu_custom_call.1} parent=1 // loop_body
      %s26 = ssub.s32 %s21, 1
      %s27 = ssub.s32 %s21, 2
      %s34 = sadd.s32 1, %s29
      %p35 = scmp.ge.s32.totalorder %s34, 2
      %s36 = scalar_select %p35, 0, %s34
      %s37 = sadd.s32 1, %s28
      %s38 = scalar_select %p35, %s37, %s28
      %p39 = scmp.ge.s32.totalorder %s38, 1
      %s40 = scalar_select %p39, 0, %s38
      %s41 = ssub.s32 %s28, %s40
      %p42 = scmp.eq.s32.totalorder %s41, 0
      %s44 = sadd.s32 %s43, 1
      %s45 = scalar_select %p42, %s43, %s44
      %p48 = pneg %p42
      %p49 = scmp.eq.s32.totalorder %s21, 1
      %p50 = por %p48, %p49
      %p51 = scmp.ne.s32.totalorder %s43, %s46
      %p52 = scmp.eq.s32.totalorder %s21, 0
      %p53 = por %p51, %p52
      %p54 = scmp.ne.s32.totalorder %s43, %s46
      %p55 = scmp.eq.s32.totalorder %s26, 1
      %p56 = por %p54, %p55
      %p57 = scmp.ne.s32.totalorder %s46, %s47
      %p58 = scmp.eq.s32.totalorder %s26, 0
      %p59 = por %p57, %p58
      %p60 = scmp.ne.s32.totalorder %s46, %s47
      %p61 = scmp.eq.s32.totalorder %s27, 1
      %p62 = por %p60, %p61
      %p64 = scmp.ne.s32.totalorder %s47, %s63
      %p65 = scmp.eq.s32.totalorder %s27, 0
      %p66 = por %p64, %p65
      %s67 = ssub.s32 %s29, %s36
      %p68 = scmp.eq.s32.totalorder %s67, 0
      %s70 = sadd.s32 %s69, 1
      %s71 = scalar_select %p68, %s69, %s70
      %p74 = pneg %p68
      %p75 = scmp.eq.s32.totalorder %s21, 1
      %p76 = por %p74, %p75
      %p77 = scmp.ne.s32.totalorder %s69, %s72
      %p78 = scmp.eq.s32.totalorder %s21, 0
      %p79 = por %p77, %p78
      %p80 = scmp.ne.s32.totalorder %s69, %s72
      %p81 = scmp.eq.s32.totalorder %s26, 1
      %p82 = por %p80, %p81
      %p83 = scmp.ne.s32.totalorder %s72, %s73
      %p84 = scmp.eq.s32.totalorder %s26, 0
      %p85 = por %p83, %p84
      %p86 = scmp.ne.s32.totalorder %s72, %s73
      %p87 = scmp.eq.s32.totalorder %s27, 1
      %p88 = por %p86, %p87
      %p90 = scmp.ne.s32.totalorder %s73, %s89
      %p91 = scmp.eq.s32.totalorder %s27, 0
      %p92 = por %p90, %p91
      %s94 = sadd.s32 %s93, 1
      %p97 = scmp.eq.s32.totalorder %s21, 1
      %p98 = scmp.ne.s32.totalorder %s93, %s95
      %p99 = scmp.eq.s32.totalorder %s21, 0
      %p100 = por %p98, %p99
      %p101 = scmp.ne.s32.totalorder %s93, %s95
      %p102 = scmp.eq.s32.totalorder %s26, 1
      %p103 = por %p101, %p102
      %p104 = scmp.ne.s32.totalorder %s95, %s96
      %p105 = scmp.eq.s32.totalorder %s26, 0
      %p106 = por %p104, %p105
      %p107 = scmp.ne.s32.totalorder %s95, %s96
      %p108 = scmp.eq.s32.totalorder %s27, 1
      %p109 = por %p107, %p108
      %p111 = scmp.ne.s32.totalorder %s96, %s110
      %p112 = scmp.eq.s32.totalorder %s27, 0
      %p113 = por %p111, %p112
      %s114 = ssub.s32 %s29, %s36
      %p115 = scmp.eq.s32.totalorder %s114, 0
      %s117 = sadd.s32 %s116, 1
      %s118 = scalar_select %p115, %s116, %s117
      %p121 = pneg %p115
      %p122 = scmp.eq.s32.totalorder %s21, 1
      %p123 = por %p121, %p122
      %p124 = scmp.ne.s32.totalorder %s116, %s119
      %p125 = scmp.eq.s32.totalorder %s21, 0
      %p126 = por %p124, %p125
      %p127 = scmp.ne.s32.totalorder %s116, %s119
      %p128 = scmp.eq.s32.totalorder %s26, 1
      %p129 = por %p127, %p128
      %p130 = scmp.ne.s32.totalorder %s119, %s120
      %p131 = scmp.eq.s32.totalorder %s26, 0
      %p132 = por %p130, %p131
      %p133 = scmp.ne.s32.totalorder %s119, %s120
      %p134 = scmp.eq.s32.totalorder %s27, 1
      %p135 = por %p133, %p134
      %p137 = scmp.ne.s32.totalorder %s120, %s136
      %p138 = scmp.eq.s32.totalorder %s27, 0
      %p139 = por %p137, %p138
      %s140 = ssub.s32 %s29, %s36
      %p141 = scmp.eq.s32.totalorder %s140, 0
      %s143 = sadd.s32 %s142, 1
      %s144 = scalar_select %p141, %s142, %s143
      %p147 = pneg %p141
      %p148 = scmp.eq.s32.totalorder %s21, 1
      %p149 = por %p147, %p148
      %p150 = scmp.ne.s32.totalorder %s142, %s145
      %p151 = scmp.eq.s32.totalorder %s21, 0
      %p152 = por %p150, %p151
      %p153 = scmp.ne.s32.totalorder %s142, %s145
      %p154 = scmp.eq.s32.totalorder %s26, 1
      %p155 = por %p153, %p154
      %p156 = scmp.ne.s32.totalorder %s145, %s146
      %p157 = scmp.eq.s32.totalorder %s26, 0
      %p158 = por %p156, %p157
      %p159 = scmp.ne.s32.totalorder %s145, %s146
      %p160 = scmp.eq.s32.totalorder %s27, 1
      %p161 = por %p159, %p160
      %p163 = scmp.ne.s32.totalorder %s146, %s162
      %p164 = scmp.eq.s32.totalorder %s27, 0
      %p165 = por %p163, %p164
      %s166 = ssub.s32 %s28, %s40
      %s167 = ssub.s32 %s29, %s36
      %s168 = sor.u32 %s166, %s167
      %p169 = scmp.eq.s32.totalorder %s168, 0
      %s171 = sadd.s32 %s170, 1
      %s172 = scalar_select %p169, %s170, %s171
      %p175 = pneg %p169
      %p176 = scmp.eq.s32.totalorder %s21, 1
      %p177 = por %p175, %p176
      %p178 = scmp.ne.s32.totalorder %s170, %s173
      %p179 = scmp.eq.s32.totalorder %s21, 0
      %p180 = por %p178, %p179
      %p181 = scmp.ne.s32.totalorder %s170, %s173
      %p182 = scmp.eq.s32.totalorder %s26, 1
      %p183 = por %p181, %p182
      %p184 = scmp.ne.s32.totalorder %s173, %s174
      %p185 = scmp.eq.s32.totalorder %s26, 0
      %p186 = por %p184, %p185
      %p187 = scmp.ne.s32.totalorder %s173, %s174
      %p188 = scmp.eq.s32.totalorder %s27, 1
      %p189 = por %p187, %p188
      %p191 = scmp.ne.s32.totalorder %s174, %s190
      %p192 = scmp.eq.s32.totalorder %s27, 0
      %p193 = por %p191, %p192
      %p194 = scmp.le.s32.totalorder 1, %s21
      %p195 = scmp.lt.s32.totalorder %s21, 3
      %p196 = pnand %p194, %p195
      %p197 = pneg %p196
      // Predicated region
      $region9: #{tpu_custom_call.1} parent=5 // pred_check
        _
      $region10: #{tpu_custom_call.1} parent=5 // pred_check_branch
        %199 = sbr.rel (%p196) target = $region12
      $region11: #{tpu_custom_call.1} parent=5 // pred_region
        %s200 = ssub.s32 %s21, 1
        // Predicated region
        $region13: #{tpu_custom_call.1} parent=11 // pred_check
          %p201 = pneg %p59
        $region14: #{tpu_custom_call.1} parent=11 // pred_check_branch
          %203 = sbr.rel (%p201) target = $region16
        $region15: #{tpu_custom_call.1} parent=11 // pred_region
          %s204 = smul.u32 4, %s30
          %s206 = ssub.s32 512, 512
          %207 = vsyncadd [#allocation3], %s206
          %s208 = smul.addr %s204, 128
          %s209 = scalar_lea.hbm %s0, %s208
          %s210 = sshll.u32 [#allocation2], 4
          %s211 = int_to_ptr.vmem [resolvable:$true] %s210
          %216 = dma.hbm_to_vmem [thread:$0]  %s209, 512, %s211, [#allocation3], 128, 128, 8
        $region16: #{tpu_custom_call.1} parent=11 // pred_fallthru
          _
        // Predicated region
        $region17: #{tpu_custom_call.1} parent=11 // pred_check
          %p217 = pneg %p106
        $region18: #{tpu_custom_call.1} parent=11 // pred_check_branch
          %219 = sbr.rel (%p217) target = $region20
        $region19: #{tpu_custom_call.1} parent=11 // pred_region
          %s221 = ssub.s32 2048, 2048
          %222 = vsyncadd [#allocation6], %s221
          %s223 = sshll.u32 [#allocation7], 4
          %s224 = int_to_ptr.vmem [resolvable:$true] %s223
          %229 = dma.hbm_to_vmem [thread:$0]  %s2, 2048, %s224, [#allocation6], 128, 128, 8
        $region20: #{tpu_custom_call.1} parent=11 // pred_fallthru
          _
      $region12: #{tpu_custom_call.1} parent=5 // pred_fallthru
        _
      %p230 = scmp.lt.s32.totalorder %s21, 2
      // Predicated region
      $region21: #{tpu_custom_call.1} parent=5 // pred_check
        %p231 = pneg %p230
      $region22: #{tpu_custom_call.1} parent=5 // pred_check_branch
        %233 = sbr.rel (%p231) target = $region24
      $region23: #{tpu_custom_call.1} parent=5 // pred_region
        // Predicated region
        $region25: #{tpu_custom_call.1} parent=23 // pred_check
          %p234 = pneg %p79
        $region26: #{tpu_custom_call.1} parent=23 // pred_check_branch
          %236 = sbr.rel (%p234) target = $region28
        $region27: #{tpu_custom_call.1} parent=23 // pred_region
          %s237 = sand.u32 %s21, 1
          %s238 = scalar_lea.sflag [#allocation6], %s237
          %s239 = sand.u32 %s69, 1
          %s240 = smul.addr %s239, 128
          %s241 = scalar_lea.vmem [#allocation5], %s240
          %s243 = ssub.s32 2048, 2048
          %244 = vsyncadd %s238, %s243
          %s245 = smul.addr %s29, 128
          %s246 = scalar_lea.hbm %s1, %s245
          %s247 = sshll.u32 %s241, 4
          %s248 = int_to_ptr.vmem [resolvable:$true] %s247
          %253 = dma.hbm_to_vmem [thread:$0]  %s246, 2048, %s248, %s238, 256, 128, 8
        $region28: #{tpu_custom_call.1} parent=23 // pred_fallthru
          _
        // Predicated region
        $region29: #{tpu_custom_call.1} parent=23 // pred_check
          %p254 = pneg %p126
        $region30: #{tpu_custom_call.1} parent=23 // pred_check_branch
          %256 = sbr.rel (%p254) target = $region32
        $region31: #{tpu_custom_call.1} parent=23 // pred_region
          %s257 = sand.u32 %s116, 1
          %s258 = scalar_lea.sflag [#allocation9], %s257
          %s259 = sand.u32 %s116, 1
          %s260 = smul.addr %s259, 128
          %s261 = scalar_lea.vmem [#allocation8], %s260
          %s263 = ssub.s32 2048, 2048
          %264 = vsyncadd %s258, %s263
          %s265 = smul.addr %s29, 128
          %s266 = scalar_lea.hbm %s3, %s265
          %s267 = sshll.u32 %s261, 4
          %s268 = int_to_ptr.vmem [resolvable:$true] %s267
          %273 = dma.hbm_to_vmem [thread:$0]  %s266, 2048, %s268, %s258, 256, 128, 8
        $region32: #{tpu_custom_call.1} parent=23 // pred_fallthru
          _
        // Predicated region
        $region33: #{tpu_custom_call.1} parent=23 // pred_check
          %p274 = pneg %p152
        $region34: #{tpu_custom_call.1} parent=23 // pred_check_branch
          %276 = sbr.rel (%p274) target = $region36
        $region35: #{tpu_custom_call.1} parent=23 // pred_region
          %p277 = scmp.lt.s32.totalorder %s29, 1
          %s278 = scalar_select %p277, %s29, 1
          %s279 = scalar_lea.vmem %s4, %s278
        $region36: #{tpu_custom_call.1} parent=23 // pred_fallthru
          _
      $region24: #{tpu_custom_call.1} parent=5 // pred_fallthru
        _
      %p280 = scmp.le.s32.totalorder 1, %s21
      %p281 = scmp.lt.s32.totalorder %s21, 3
      %p282 = pnand %p280, %p281
      %p283 = pneg %p282
      // Predicated region
      $region37: #{tpu_custom_call.1} parent=5 // pred_check
        _
      $region38: #{tpu_custom_call.1} parent=5 // pred_check_branch
        %285 = sbr.rel (%p282) target = $region40
      $region39: #{tpu_custom_call.1} parent=5 // pred_region
        %s286 = ssub.s32 %s21, 1
        // Predicated region
        $region41: #{tpu_custom_call.1} parent=39 // pred_check
          %p287 = pneg %p59
        $region42: #{tpu_custom_call.1} parent=39 // pred_check_branch
          %289 = sbr.rel (%p287) target = $region44
        $region43: #{tpu_custom_call.1} parent=39 // pred_region
          %290 = dma.done [#allocation3], 512
        $region44: #{tpu_custom_call.1} parent=39 // pred_fallthru
          _
        %s291 = sand.u32 %s26, 1
        %s292 = scalar_lea.sflag [#allocation6], %s291
        %s293 = sand.u32 %s72, 1
        %s294 = smul.addr %s293, 128
        %s295 = scalar_lea.vmem [#allocation5], %s294
        // Predicated region
        $region45: #{tpu_custom_call.1} parent=39 // pred_check
          %p296 = pneg %p85
        $region46: #{tpu_custom_call.1} parent=39 // pred_check_branch
          %298 = sbr.rel (%p296) target = $region48
        $region47: #{tpu_custom_call.1} parent=39 // pred_region
          %299 = dma.done %s292, 2048
        $region48: #{tpu_custom_call.1} parent=39 // pred_fallthru
          _
        // Predicated region
        $region49: #{tpu_custom_call.1} parent=39 // pred_check
          %p300 = pneg %p106
        $region50: #{tpu_custom_call.1} parent=39 // pred_check_branch
          %302 = sbr.rel (%p300) target = $region52
        $region51: #{tpu_custom_call.1} parent=39 // pred_region
          %303 = dma.done [#allocation6], 2048
        $region52: #{tpu_custom_call.1} parent=39 // pred_fallthru
          _
        %s304 = sand.u32 %s119, 1
        %s305 = scalar_lea.sflag [#allocation9], %s304
        %s306 = sand.u32 %s119, 1
        %s307 = smul.addr %s306, 128
        %s308 = scalar_lea.vmem [#allocation8], %s307
        // Predicated region
        $region53: #{tpu_custom_call.1} parent=39 // pred_check
          %p309 = pneg %p132
        $region54: #{tpu_custom_call.1} parent=39 // pred_check_branch
          %311 = sbr.rel (%p309) target = $region56
        $region55: #{tpu_custom_call.1} parent=39 // pred_region
          %312 = dma.done %s305, 2048
        $region56: #{tpu_custom_call.1} parent=39 // pred_fallthru
          _
        %p313 = pneg %p59
        %p314 = pneg %p56
        %s315 = sand.u32 %s26, 1
        %s316 = scalar_lea.sflag [#allocation6], %s315
        %s317 = sand.u32 %s72, 1
        %s318 = smul.addr %s317, 128
        %s319 = scalar_lea.vmem [#allocation5], %s318
        %p320 = pneg %p85
        %p321 = pneg %p82
        %p322 = pneg %p106
        %p323 = pneg %p103
        %s324 = sand.u32 %s119, 1
        %s325 = scalar_lea.sflag [#allocation9], %s324
        %s326 = sand.u32 %s119, 1
        %s327 = smul.addr %s326, 128
        %s328 = scalar_lea.vmem [#allocation8], %s327
        %p329 = pneg %p132
        %p330 = pneg %p129
        %p331 = scmp.lt.s32.totalorder %s31, 1
        %s332 = scalar_select %p331, %s31, 1
        %s333 = scalar_lea.vmem %s4, %s332
        %p334 = pneg %p158
        %p335 = pneg %p155
        %p336 = pneg %p186
        %p337 = pneg %p183
        %s338 = sand.u32 %s173, 1
        %s339 = scalar_lea.sflag [#allocation4], %s338
        %s340 = sand.u32 %s173, 1
        %s341 = smul.addr %s340, 32
        %s342 = scalar_lea.vmem [#allocation10], %s341
        %s343 = smul.u32 4, %s30
        %p344 = scmp.lt.s32.totalorder %s31, 1
        %s345 = scalar_select %p344, %s31, 1
        %s346 = scalar_lea.vmem %s4, %s345
        %s347 = smul.u32 4, %s30
        %v348 = vld [vmem:[#allocation2] sm:$0xff]
        %v349 = vld [vmem:[#allocation2 + $0x8] sm:$0xff]
        %v350 = vld [vmem:[#allocation2 + $0x10] sm:$0xff]
        %v351 = vld [vmem:[#allocation2 + $0x18] sm:$0xff]
        %v352 = vld [vmem:[%s295] sm:$0xff]
        %v353 = vld [vmem:[%s295 + $0x8] sm:$0xff]
        %v354 = vld [vmem:[%s295 + $0x10] sm:$0xff]
        %v355 = vld [vmem:[%s295 + $0x18] sm:$0xff]
        %v356 = vld [vmem:[%s295 + $0x20] sm:$0xff]
        %v357 = vld [vmem:[%s295 + $0x28] sm:$0xff]
        %v358 = vld [vmem:[%s295 + $0x30] sm:$0xff]
        %v359 = vld [vmem:[%s295 + $0x38] sm:$0xff]
        %v360 = vld [vmem:[%s295 + $0x40] sm:$0xff]
        %v361 = vld [vmem:[%s295 + $0x48] sm:$0xff]
        %v362 = vld [vmem:[%s295 + $0x50] sm:$0xff]
        %v363 = vld [vmem:[%s295 + $0x58] sm:$0xff]
        %v364 = vld [vmem:[%s295 + $0x60] sm:$0xff]
        %v365 = vld [vmem:[%s295 + $0x68] sm:$0xff]
        %v366 = vld [vmem:[%s295 + $0x70] sm:$0xff]
        %v367 = vld [vmem:[%s295 + $0x78] sm:$0xff]
        %v368 = vld [vmem:[#allocation7] sm:$0xff]
        %v369 = vld [vmem:[#allocation7 + $0x8] sm:$0xff]
        %v370 = vld [vmem:[#allocation7 + $0x10] sm:$0xff]
        %v371 = vld [vmem:[#allocation7 + $0x18] sm:$0xff]
        %v372 = vld [vmem:[#allocation7 + $0x20] sm:$0xff]
        %v373 = vld [vmem:[#allocation7 + $0x28] sm:$0xff]
        %v374 = vld [vmem:[#allocation7 + $0x30] sm:$0xff]
        %v375 = vld [vmem:[#allocation7 + $0x38] sm:$0xff]
        %v376 = vld [vmem:[#allocation7 + $0x40] sm:$0xff]
        %v377 = vld [vmem:[#allocation7 + $0x48] sm:$0xff]
        %v378 = vld [vmem:[#allocation7 + $0x50] sm:$0xff]
        %v379 = vld [vmem:[#allocation7 + $0x58] sm:$0xff]
        %v380 = vld [vmem:[#allocation7 + $0x60] sm:$0xff]
        %v381 = vld [vmem:[#allocation7 + $0x68] sm:$0xff]
        %v382 = vld [vmem:[#allocation7 + $0x70] sm:$0xff]
        %v383 = vld [vmem:[#allocation7 + $0x78] sm:$0xff]
        %384 = vmatprep.subr.mxu0 0.0
        %385 = vmatpush1.msra.mxu0 %v383
        %386 = vmatprep.subr.mxu0 0.0
        %387 = vmatpush1.msra.mxu0 %v382
        %388 = vmatprep.subr.mxu0 0.0
        %389 = vmatpush1.msra.mxu0 %v381
        %390 = vmatprep.subr.mxu0 0.0
        %391 = vmatpush1.msra.mxu0 %v380
        %392 = vmatprep.subr.mxu0 0.0
        %393 = vmatpush1.msra.mxu0 %v379
        %394 = vmatprep.subr.mxu0 0.0
        %395 = vmatpush1.msra.mxu0 %v378
        %396 = vmatprep.subr.mxu0 0.0
        %397 = vmatpush1.msra.mxu0 %v377
        %398 = vmatprep.subr.mxu0 0.0
        %399 = vmatpush1.msra.mxu0 %v376
        %400 = vmatprep.subr.mxu0 0.0
        %401 = vmatpush1.msra.mxu0 %v375
        %402 = vmatprep.subr.mxu0 0.0
        %403 = vmatpush1.msra.mxu0 %v374
        %404 = vmatprep.subr.mxu0 0.0
        %405 = vmatpush1.msra.mxu0 %v373
        %406 = vmatprep.subr.mxu0 0.0
        %407 = vmatpush1.msra.mxu0 %v372
        %408 = vmatprep.subr.mxu0 0.0
        %409 = vmatpush1.msra.mxu0 %v371
        %410 = vmatprep.subr.mxu0 0.0
        %411 = vmatpush1.msra.mxu0 %v370
        %412 = vmatprep.subr.mxu0 0.0
        %413 = vmatpush1.msra.mxu0 %v369
        %414 = vmatprep.subr.mxu0 0.0
        %415 = vmatpush1.msra.mxu0 %v368
        %416 = vmatprep.subr.mxu0 0.0
        %417 = vmatpush2.msra.mxu0 0.0
        %418 = vmatprep.subr.mxu0 0.0
        %419 = vmatpush2.msra.mxu0 0.0
        %420 = vmatprep.subr.mxu0 0.0
        %421 = vmatpush2.msra.mxu0 0.0
        %422 = vmatprep.subr.mxu0 0.0
        %423 = vmatpush2.msra.mxu0 0.0
        %424 = vmatprep.subr.mxu0 0.0
        %425 = vmatpush2.msra.mxu0 0.0
        %426 = vmatprep.subr.mxu0 0.0
        %427 = vmatpush2.msra.mxu0 0.0
        %428 = vmatprep.subr.mxu0 0.0
        %429 = vmatpush2.msra.mxu0 0.0
        %430 = vmatprep.subr.mxu0 0.0
        %431 = vmatpush2.msra.mxu0 0.0
        %432 = vmatprep.subr.mxu0 0.0
        %433 = vmatpush2.msra.mxu0 0.0
        %434 = vmatprep.subr.mxu0 0.0
        %435 = vmatpush2.msra.mxu0 0.0
        %436 = vmatprep.subr.mxu0 0.0
        %437 = vmatpush2.msra.mxu0 0.0
        %438 = vmatprep.subr.mxu0 0.0
        %439 = vmatpush2.msra.mxu0 0.0
        %440 = vmatprep.subr.mxu0 0.0
        %441 = vmatpush2.msra.mxu0 0.0
        %442 = vmatprep.subr.mxu0 0.0
        %443 = vmatpush2.msra.mxu0 0.0
        %444 = vmatprep.subr.mxu0 0.0
        %445 = vmatpush2.msra.mxu0 0.0
        %446 = vmatprep.subr.mxu0 0.0
        %447 = vmatpush2.msra.mxu0 0.0
        %448 = vmatprep.mubr.f32.mxu0 0.0
        %449 = vmatmul.mubr.f32.gmra.mxu0 %v348
        %v450 = vpop.f32.mrf.mxu0
        %v451 = vadd.f32 0.0, %v450
        %v452 = vpop.f32.mrf.mxu0
        %453 = vmatprep.mubr.f32.mxu0 0.0
        %454 = vmatmul.mubr.f32.gmra.mxu0 %v349
        %v455 = vpop.f32.mrf.mxu0
        %v456 = vadd.f32 0.0, %v455
        %v457 = vpop.f32.mrf.mxu0
        %458 = vmatprep.mubr.f32.mxu0 0.0
        %459 = vmatmul.mubr.f32.gmra.mxu0 %v350
        %v460 = vpop.f32.mrf.mxu0
        %v461 = vadd.f32 0.0, %v460
        %v462 = vpop.f32.mrf.mxu0
        %463 = vmatprep.mubr.f32.mxu0 0.0
        %464 = vmatmul.mubr.f32.gmra.mxu0 %v351
        %v465 = vpop.f32.mrf.mxu0
        %v466 = vadd.f32 0.0, %v465
        %v467 = vpop.f32.mrf.mxu0
        %468 = vdwg.mxu0
        %v469 = vld [vmem:[%s308] sm:$0xff]
        %v470 = vld [vmem:[%s308 + $0x8] sm:$0xff]
        %v471 = vld [vmem:[%s308 + $0x10] sm:$0xff]
        %v472 = vld [vmem:[%s308 + $0x18] sm:$0xff]
        %v473 = vld [vmem:[%s308 + $0x20] sm:$0xff]
        %v474 = vld [vmem:[%s308 + $0x28] sm:$0xff]
        %v475 = vld [vmem:[%s308 + $0x30] sm:$0xff]
        %v476 = vld [vmem:[%s308 + $0x38] sm:$0xff]
        %v477 = vld [vmem:[%s308 + $0x40] sm:$0xff]
        %v478 = vld [vmem:[%s308 + $0x48] sm:$0xff]
        %v479 = vld [vmem:[%s308 + $0x50] sm:$0xff]
        %v480 = vld [vmem:[%s308 + $0x58] sm:$0xff]
        %v481 = vld [vmem:[%s308 + $0x60] sm:$0xff]
        %v482 = vld [vmem:[%s308 + $0x68] sm:$0xff]
        %v483 = vld [vmem:[%s308 + $0x70] sm:$0xff]
        %v484 = vld [vmem:[%s308 + $0x78] sm:$0xff]
        %485 = vmatprep.subr.mxu0 0.0
        %486 = vmatpush1.msra.mxu0 %v484
        %487 = vmatprep.subr.mxu0 0.0
        %488 = vmatpush1.msra.mxu0 %v483
        %489 = vmatprep.subr.mxu0 0.0
        %490 = vmatpush1.msra.mxu0 %v482
        %491 = vmatprep.subr.mxu0 0.0
        %492 = vmatpush1.msra.mxu0 %v481
        %493 = vmatprep.subr.mxu0 0.0
        %494 = vmatpush1.msra.mxu0 %v480
        %495 = vmatprep.subr.mxu0 0.0
        %496 = vmatpush1.msra.mxu0 %v479
        %497 = vmatprep.subr.mxu0 0.0
        %498 = vmatpush1.msra.mxu0 %v478
        %499 = vmatprep.subr.mxu0 0.0
        %500 = vmatpush1.msra.mxu0 %v477
        %501 = vmatprep.subr.mxu0 0.0
        %502 = vmatpush1.msra.mxu0 %v476
        %503 = vmatprep.subr.mxu0 0.0
        %504 = vmatpush1.msra.mxu0 %v475
        %505 = vmatprep.subr.mxu0 0.0
        %506 = vmatpush1.msra.mxu0 %v474
        %507 = vmatprep.subr.mxu0 0.0
        %508 = vmatpush1.msra.mxu0 %v473
        %509 = vmatprep.subr.mxu0 0.0
        %510 = vmatpush1.msra.mxu0 %v472
        %511 = vmatprep.subr.mxu0 0.0
        %512 = vmatpush1.msra.mxu0 %v471
        %513 = vmatprep.subr.mxu0 0.0
        %514 = vmatpush1.msra.mxu0 %v470
        %515 = vmatprep.subr.mxu0 0.0
        %516 = vmatpush1.msra.mxu0 %v469
        %517 = vmatprep.subr.mxu0 0.0
        %518 = vmatpush2.msra.mxu0 0.0
        %519 = vmatprep.subr.mxu0 0.0
        %520 = vmatpush2.msra.mxu0 0.0
        %521 = vmatprep.subr.mxu0 0.0
        %522 = vmatpush2.msra.mxu0 0.0
        %523 = vmatprep.subr.mxu0 0.0
        %524 = vmatpush2.msra.mxu0 0.0
        %525 = vmatprep.subr.mxu0 0.0
        %526 = vmatpush2.msra.mxu0 0.0
        %527 = vmatprep.subr.mxu0 0.0
        %528 = vmatpush2.msra.mxu0 0.0
        %529 = vmatprep.subr.mxu0 0.0
        %530 = vmatpush2.msra.mxu0 0.0
        %531 = vmatprep.subr.mxu0 0.0
        %532 = vmatpush2.msra.mxu0 0.0
        %533 = vmatprep.subr.mxu0 0.0
        %534 = vmatpush2.msra.mxu0 0.0
        %535 = vmatprep.subr.mxu0 0.0
        %536 = vmatpush2.msra.mxu0 0.0
        %537 = vmatprep.subr.mxu0 0.0
        %538 = vmatpush2.msra.mxu0 0.0
        %539 = vmatprep.subr.mxu0 0.0
        %540 = vmatpush2.msra.mxu0 0.0
        %541 = vmatprep.subr.mxu0 0.0
        %542 = vmatpush2.msra.mxu0 0.0
        %543 = vmatprep.subr.mxu0 0.0
        %544 = vmatpush2.msra.mxu0 0.0
        %545 = vmatprep.subr.mxu0 0.0
        %546 = vmatpush2.msra.mxu0 0.0
        %547 = vmatprep.subr.mxu0 0.0
        %548 = vmatpush2.msra.mxu0 0.0
        %549 = vmatprep.mubr.f32.mxu0 0.0
        %550 = vmatmul.mubr.f32.gmra.mxu0 %v451
        %v551 = vpop.f32.mrf.mxu0
        %v552 = vadd.f32 0.0, %v551
        %v553 = vpop.f32.mrf.mxu0
        %554 = vmatprep.mubr.f32.mxu0 0.0
        %555 = vmatmul.mubr.f32.gmra.mxu0 %v456
        %v556 = vpop.f32.mrf.mxu0
        %v557 = vadd.f32 0.0, %v556
        %v558 = vpop.f32.mrf.mxu0
        %559 = vmatprep.mubr.f32.mxu0 0.0
        %560 = vmatmul.mubr.f32.gmra.mxu0 %v461
        %v561 = vpop.f32.mrf.mxu0
        %v562 = vadd.f32 0.0, %v561
        %v563 = vpop.f32.mrf.mxu0
        %564 = vmatprep.mubr.f32.mxu0 0.0
        %565 = vmatmul.mubr.f32.gmra.mxu0 %v466
        %v566 = vpop.f32.mrf.mxu0
        %v567 = vadd.f32 0.0, %v566
        %v568 = vpop.f32.mrf.mxu0
        %569 = vdwg.mxu0
        %570 = vmatprep.subr.mxu0 0.0
        %571 = vmatpush1.msra.mxu0 %v367
        %572 = vmatprep.subr.mxu0 0.0
        %573 = vmatpush1.msra.mxu0 %v366
        %574 = vmatprep.subr.mxu0 0.0
        %575 = vmatpush1.msra.mxu0 %v365
        %576 = vmatprep.subr.mxu0 0.0
        %577 = vmatpush1.msra.mxu0 %v364
        %578 = vmatprep.subr.mxu0 0.0
        %579 = vmatpush1.msra.mxu0 %v363
        %580 = vmatprep.subr.mxu0 0.0
        %581 = vmatpush1.msra.mxu0 %v362
        %582 = vmatprep.subr.mxu0 0.0
        %583 = vmatpush1.msra.mxu0 %v361
        %584 = vmatprep.subr.mxu0 0.0
        %585 = vmatpush1.msra.mxu0 %v360
        %586 = vmatprep.subr.mxu0 0.0
        %587 = vmatpush1.msra.mxu0 %v359
        %588 = vmatprep.subr.mxu0 0.0
        %589 = vmatpush1.msra.mxu0 %v358
        %590 = vmatprep.subr.mxu0 0.0
        %591 = vmatpush1.msra.mxu0 %v357
        %592 = vmatprep.subr.mxu0 0.0
        %593 = vmatpush1.msra.mxu0 %v356
        %594 = vmatprep.subr.mxu0 0.0
        %595 = vmatpush1.msra.mxu0 %v355
        %596 = vmatprep.subr.mxu0 0.0
        %597 = vmatpush1.msra.mxu0 %v354
        %598 = vmatprep.subr.mxu0 0.0
        %599 = vmatpush1.msra.mxu0 %v353
        %600 = vmatprep.subr.mxu0 0.0
        %601 = vmatpush1.msra.mxu0 %v352
        %602 = vmatprep.subr.mxu0 0.0
        %603 = vmatpush2.msra.mxu0 0.0
        %604 = vmatprep.subr.mxu0 0.0
        %605 = vmatpush2.msra.mxu0 0.0
        %606 = vmatprep.subr.mxu0 0.0
        %607 = vmatpush2.msra.mxu0 0.0
        %608 = vmatprep.subr.mxu0 0.0
        %609 = vmatpush2.msra.mxu0 0.0
        %610 = vmatprep.subr.mxu0 0.0
        %611 = vmatpush2.msra.mxu0 0.0
        %612 = vmatprep.subr.mxu0 0.0
        %613 = vmatpush2.msra.mxu0 0.0
        %614 = vmatprep.subr.mxu0 0.0
        %615 = vmatpush2.msra.mxu0 0.0
        %616 = vmatprep.subr.mxu0 0.0
        %617 = vmatpush2.msra.mxu0 0.0
        %618 = vmatprep.subr.mxu0 0.0
        %619 = vmatpush2.msra.mxu0 0.0
        %620 = vmatprep.subr.mxu0 0.0
        %621 = vmatpush2.msra.mxu0 0.0
        %622 = vmatprep.subr.mxu0 0.0
        %623 = vmatpush2.msra.mxu0 0.0
        %624 = vmatprep.subr.mxu0 0.0
        %625 = vmatpush2.msra.mxu0 0.0
        %626 = vmatprep.subr.mxu0 0.0
        %627 = vmatpush2.msra.mxu0 0.0
        %628 = vmatprep.subr.mxu0 0.0
        %629 = vmatpush2.msra.mxu0 0.0
        %630 = vmatprep.subr.mxu0 0.0
        %631 = vmatpush2.msra.mxu0 0.0
        %632 = vmatprep.subr.mxu0 0.0
        %633 = vmatpush2.msra.mxu0 0.0
        %634 = vmatprep.mubr.f32.mxu0 0.0
        %635 = vmatmul.mubr.f32.gmra.mxu0 %v348
        %v636 = vpop.f32.mrf.mxu0
        %v637 = vadd.f32 %v552, %v636
        %v638 = vpop.f32.mrf.mxu0
        %639 = vmatprep.mubr.f32.mxu0 0.0
        %640 = vmatmul.mubr.f32.gmra.mxu0 %v349
        %v641 = vpop.f32.mrf.mxu0
        %v642 = vadd.f32 %v557, %v641
        %v643 = vpop.f32.mrf.mxu0
        %644 = vmatprep.mubr.f32.mxu0 0.0
        %645 = vmatmul.mubr.f32.gmra.mxu0 %v350
        %v646 = vpop.f32.mrf.mxu0
        %v647 = vadd.f32 %v562, %v646
        %v648 = vpop.f32.mrf.mxu0
        %649 = vmatprep.mubr.f32.mxu0 0.0
        %650 = vmatmul.mubr.f32.gmra.mxu0 %v351
        %v651 = vpop.f32.mrf.mxu0
        %v652 = vadd.f32 %v567, %v651
        %v653 = vpop.f32.mrf.mxu0
        %654 = vdwg.mxu0
        %v655 = vld [vmem:[%s346] sm:$0x1]
        %v657 = vlaneseq
        %v658 = vshrl.u32 %v657, 7
        %v659 = vsub.s32 0, %v658
        %v660 = vrot.slane %v655, %v659
        %v662 = vadd.f32 %v637, %v660
        %v663 = vadd.f32 %v642, %v660
        %v664 = vadd.f32 %v647, %v660
        %v665 = vadd.f32 %v652, %v660
        %666 = vst [vmem:[%s342] sm:$0xff] %v662
        %667 = vst [vmem:[%s342 + $0x8] sm:$0xff] %v663
        %668 = vst [vmem:[%s342 + $0x10] sm:$0xff] %v664
        %669 = vst [vmem:[%s342 + $0x18] sm:$0xff] %v665
        %s670 = sand.u32 %s173, 1
        %s671 = scalar_lea.sflag [#allocation4], %s670
        %s672 = sand.u32 %s173, 1
        %s673 = smul.addr %s672, 32
        %s674 = scalar_lea.vmem [#allocation10], %s673
        // Predicated region
        $region57: #{tpu_custom_call.1} parent=39 // pred_check
          %p675 = pneg %p183
        $region58: #{tpu_custom_call.1} parent=39 // pred_check_branch
          %677 = sbr.rel (%p675) target = $region60
        $region59: #{tpu_custom_call.1} parent=39 // pred_region
          %s678 = smul.u32 4, %s30
          %s680 = ssub.s32 512, 512
          %681 = vsyncadd %s671, %s680
          %s682 = smul.addr %s678, 2
          %s683 = sadd.s32 %s31, %s682
          %s684 = smul.addr %s683, 128
          %s685 = scalar_lea.hbm %s5, %s684
          %s686 = sshll.u32 %s674, 4
          %s687 = int_to_ptr.vmem [resolvable:$true] %s686
          %692 = dma.vmem_to_hbm [thread:$0]  %s687, 512, %s685, %s671, 128, 256, 8
        $region60: #{tpu_custom_call.1} parent=39 // pred_fallthru
          _
      $region40: #{tpu_custom_call.1} parent=5 // pred_fallthru
        _
      %p693 = scmp.le.s32.totalorder 2, %s21
      // Predicated region
      $region61: #{tpu_custom_call.1} parent=5 // pred_check
        %p694 = pneg %p693
      $region62: #{tpu_custom_call.1} parent=5 // pred_check_branch
        %696 = sbr.rel (%p694) target = $region64
      $region63: #{tpu_custom_call.1} parent=5 // pred_region
        %s697 = ssub.s32 %s21, 2
        // Predicated region
        $region65: #{tpu_custom_call.1} parent=63 // pred_check
          %p698 = pneg %p189
        $region66: #{tpu_custom_call.1} parent=63 // pred_check_branch
          %700 = sbr.rel (%p698) target = $region68
        $region67: #{tpu_custom_call.1} parent=63 // pred_region
          %s701 = sand.u32 %s174, 1
          %s702 = scalar_lea.sflag [#allocation4], %s701
          %s703 = sand.u32 %s174, 1
          %s704 = smul.addr %s703, 32
          %s705 = scalar_lea.vmem [#allocation10], %s704
          %706 = dma.done %s702, 512
        $region68: #{tpu_custom_call.1} parent=63 // pred_fallthru
          _
      $region64: #{tpu_custom_call.1} parent=5 // pred_fallthru
        _
    $region6: #{tpu_custom_call.1} parent=1 // loop_footer
      %s25 = sadd.s32 1, %s21
    $region7: #{tpu_custom_call.1} parent=1 // loop_footer_branch
      %20 = sbr.rel target = $region3
    $region8: #{tpu_custom_call.1} parent=1 // loop_exit
      _
    %707 = vsyncpa [#allocation3], 1
    %s708 = scalar_lea.sflag [#allocation3], 1
    %709 = vsyncpa %s708, 1
    %710 = vsyncpa [#allocation6], 1
    %s711 = scalar_lea.sflag [#allocation6], 1
    %712 = vsyncpa %s711, 1
    %713 = vsyncpa [#allocation9], 1
    %s714 = scalar_lea.sflag [#allocation9], 1
    %715 = vsyncpa %s714, 1
    %716 = vsyncpa [#allocation4], 1
    %s717 = scalar_lea.sflag [#allocation4], 1
    %718 = vsyncpa %s717, 1

</llo_original>
